<compile_context>
chip_gen: v7x
topology: tpu7x:2x2x1
jax: 0.10.0
libtpu: 0.0.40
codegen_flags: <defaults>
</compile_context>

<pallas_src>
import functools
import math

import jax
import jax.numpy as jnp
from jax import lax
from jax.experimental import pallas as pl
from jax.experimental.pallas import tpu as pltpu


# ----------------------------- fused kernel -------------------------------- #

def fused_attention_kernel(x_ref, g_ref, bta_ref, w_ref, b_ref,
                           o_ref, kst_ref, vst_ref,
                           *, eps, num_heads, head_dim, local_attn, scale):
    """One batch element per grid step.

    x_ref:    (1, S, H)  f32        g_ref/bta_ref: (1, H) f32
    w_ref:    (H, 3H)    bf16       b_ref:         (1, 3H) f32
    o_ref:    (1, S, H)  f32        merged-head output
    kst_ref:  (1, local_attn, H)    lane-dense key   state slab (f32)
    vst_ref:  (1, local_attn, H)    lane-dense value state slab (f32)
    """
    S = x_ref.shape[1]
    H = x_ref.shape[2]

    # --- LayerNorm (biased variance, like torch), stats in f32 ---
    x = x_ref[0]                                               # (S, H)
    mean = jnp.mean(x, axis=-1, keepdims=True)
    var = jnp.mean((x - mean) ** 2, axis=-1, keepdims=True)
    xn = (x - mean) * lax.rsqrt(var + eps)
    xn = xn * g_ref[...] + bta_ref[...]                        # (S, H) f32

    # --- in_proj on the MXU: bf16 operands, f32 accumulation ---
    qkv = jnp.dot(xn.astype(jnp.bfloat16), w_ref[...],
                  preferred_element_type=jnp.float32)
    qkv = qkv + b_ref[...]                                     # (S, 3H) f32

    # --- causal local-attention band generated in-kernel (no (S,S) bias DMA) ---
    row = lax.broadcasted_iota(jnp.int32, (S, S), 0)
    col = lax.broadcasted_iota(jnp.int32, (S, S), 1)
    allowed = (col <= row) & (row - col < local_attn)
    neg_big = jnp.float32(-1e30)

    # --- state: one lane-dense slab store per output (unmasked vst) ---
    kst_ref[0] = qkv[S - local_attn:, H:2 * H].astype(kst_ref.dtype)
    vst_ref[0] = qkv[S - local_attn:, 2 * H:3 * H].astype(vst_ref.dtype)

    # --- per-head attention (static unroll; static lane slices of qkv) ---
    for h in range(num_heads):
        lo = h * head_dim
        hi = lo + head_dim
        # softmax scale folded into q (O(S*D) instead of O(S*S))
        qh = (qkv[:, lo:hi] * scale).astype(jnp.bfloat16)            # (S, D)
        kh = qkv[:, H + lo:H + hi].astype(jnp.bfloat16)              # (S, D)
        vh = qkv[:, 2 * H + lo:2 * H + hi].astype(jnp.bfloat16)      # (S, D)

        # scores: contract on D directly (no k.T transpose), f32 accumulate
        s = lax.dot_general(qh, kh, (((1,), (1,)), ((), ())),
                            preferred_element_type=jnp.float32)      # (S, S)
        s = jnp.where(allowed, s, neg_big)

        m = jnp.max(s, axis=-1, keepdims=True)
        p = jnp.exp(s - m)                                           # f32
        l = jnp.sum(p, axis=-1, keepdims=True)
        # normalize AFTER the PV matmul: O(S*D) work, exact f32 divide
        o = jnp.dot(p.astype(jnp.bfloat16), vh,
                    preferred_element_type=jnp.float32)              # (S, D)
        o = o * (1.0 / l)
        o_ref[0, :, lo:hi] = o.astype(o_ref.dtype)


# ------------------------------ JAX wrapper -------------------------------- #

def attention_forward(x, params, *, num_heads, local_attn, eps=1e-5):
    """Returns (out, (state_key, state_value)) — matches Attention.forward
    with state=None, dropout p=0.0, and the causal local-attention band mask."""
    B, S, H = x.shape
    assert H % num_heads == 0
    D = H // num_heads
    # TODO(synk): support S < local_attn (the PyTorch [-local_attn:] slice
    # degrades gracefully; a fixed (local_attn, H) output block does not).
    assert S >= local_attn, "kernel assumes S >= local_attn"
    gamma, beta, w_in, b_in = params
    scale = 1.0 / math.sqrt(D)

    kernel = functools.partial(
        fused_attention_kernel, eps=eps, num_heads=num_heads, head_dim=D,
        local_attn=local_attn, scale=scale)

    out, kst, vst = pl.pallas_call(
        kernel,
        out_shape=(
            jax.ShapeDtypeStruct((B, S, H), jnp.float32),
            jax.ShapeDtypeStruct((B, local_attn, H), jnp.float32),
            jax.ShapeDtypeStruct((B, local_attn, H), jnp.float32),
        ),
        grid=(B,),
        in_specs=[
            pl.BlockSpec((1, S, H), lambda b: (b, 0, 0)),
            pl.BlockSpec((1, H), lambda b: (0, 0)),
            pl.BlockSpec((1, H), lambda b: (0, 0)),
            pl.BlockSpec((H, 3 * H), lambda b: (0, 0)),
            pl.BlockSpec((1, 3 * H), lambda b: (0, 0)),
        ],
        out_specs=[
            pl.BlockSpec((1, S, H), lambda b: (b, 0, 0)),
            pl.BlockSpec((1, local_attn, H), lambda b: (b, 0, 0)),
            pl.BlockSpec((1, local_attn, H), lambda b: (b, 0, 0)),
        ],
        compiler_params=pltpu.CompilerParams(
            dimension_semantics=("parallel",),   # batch axis across v7x TCs
            vmem_limit_bytes=32 * 1024 * 1024),
    )(x, gamma, beta, w_in.astype(jnp.bfloat16), b_in)

    # lane-dense (B, local, H) slabs -> module's (B, nH, local, D) state layout
    state_k = kst.reshape(B, local_attn, num_heads, D).transpose(0, 2, 1, 3)
    state_v = vst.reshape(B, local_attn, num_heads, D).transpose(0, 2, 1, 3)
    # dropout(p=0.0) is identity
    return out, (state_k, state_v)


# ------------------------------ pure-JAX ref -------------------------------- #

def reference_forward(x, params, mask, *, num_heads, local_attn, eps=1e-5,
                      matmul_dtype=jnp.bfloat16):
    """Pure-JAX reference for Attention.forward (state=None, dropout p=0.0).

    matmul_dtype=bf16 mirrors the kernel's MXU policy (bf16 operands, f32
    accumulation — the same policy XLA applies by default to f32 matmuls on
    TPU). Pass jnp.float32 for an exact-f32 reference.
    """
    B, S, H = x.shape
    D = H // num_heads
    gamma, beta, w_in, b_in = params
    scale = 1.0 / math.sqrt(D)
    prec = lax.Precision.HIGHEST

    mean = jnp.mean(x, axis=-1, keepdims=True)
    var = jnp.mean((x - mean) ** 2, axis=-1, keepdims=True)
    xn = (x - mean) * lax.rsqrt(var + eps) * gamma[0] + beta[0]

    qkv = jnp.dot(xn.astype(matmul_dtype), w_in.astype(matmul_dtype),
                  preferred_element_type=jnp.float32, precision=prec) + b_in[0]
    q, k, v = jnp.split(qkv, 3, axis=-1)
    to_heads = lambda t: t.reshape(B, S, num_heads, D).transpose(0, 2, 1, 3)
    qh, kh, vh = to_heads(q), to_heads(k), to_heads(v)

    bias = jnp.where(mask[-S:, -S:], 0.0, -1e30).astype(jnp.float32)
    s = jnp.einsum("bhqd,bhkd->bhqk",
                   (qh * scale).astype(matmul_dtype), kh.astype(matmul_dtype),
                   preferred_element_type=jnp.float32, precision=prec) + bias
    m = jnp.max(s, axis=-1, keepdims=True)
    e = jnp.exp(s - m)
    l = jnp.sum(e, axis=-1, keepdims=True)
    o = jnp.einsum("bhqk,bhkd->bhqd",
                   e.astype(matmul_dtype), vh.astype(matmul_dtype),
                   preferred_element_type=jnp.float32, precision=prec) / l
    out = o.transpose(0, 2, 1, 3).reshape(B, S, H)
    return out, (kh[:, :, -local_attn:, :], vh[:, :, -local_attn:, :])


# --------------------------------- main ------------------------------------ #

if __name__ == "__main__":
    B, S, H = 2, 8, 32
    num_heads, local_attn = 4, 4
    eps = 1e-5
    D = H // num_heads

    key = jax.random.PRNGKey(0)
    kx, kg, kb, kw, kbi = jax.random.split(key, 5)

    x = jax.random.normal(kx, (B, S, H), dtype=jnp.float32)

    # deterministic synthetic parameters (LayerNorm + in_proj; out_proj unused)
    gamma = (1.0 + 0.1 * jax.random.normal(kg, (1, H))).astype(jnp.float32)
    beta = (0.1 * jax.random.normal(kb, (1, H))).astype(jnp.float32)
    w_in = (0.1 * jax.random.normal(kw, (H, 3 * H))).astype(jnp.float32)
    b_in = (0.01 * jax.random.normal(kbi, (1, 3 * H))).astype(jnp.float32)
    params = (gamma, beta, w_in, b_in)

    # local causal attention mask (True = attend) — used by the reference; the
    # kernel generates the same band in-kernel via broadcasted_iota.
    i = jnp.arange(S)[:, None]
    j = jnp.arange(S)[None, :]
    mask = (j <= i) & (i - j < local_attn)

    out, (state_k, state_v) = attention_forward(
        x, params, num_heads=num_heads, local_attn=local_attn, eps=eps)
    out = jax.block_until_ready(out)
    state_k = jax.block_until_ready(state_k)
    state_v = jax.block_until_ready(state_v)

    ref_out, (ref_k, ref_v) = reference_forward(
        x, params, mask, num_heads=num_heads, local_attn=local_attn, eps=eps)

    assert out.shape == (B, S, H)
    assert state_k.shape == (B, num_heads, local_attn, D)
    assert state_v.shape == (B, num_heads, local_attn, D)
    # Tolerances cover MXU-vs-XLA accumulation-order and transcendental
    # differences; kernel and reference share the same bf16-operand /
    # f32-accumulate matmul policy, so the expected deviation is << 1e-2.
    assert jnp.allclose(out, ref_out, atol=1e-2, rtol=1e-2), "attention output mismatch"
    assert jnp.allclose(state_k, ref_k, atol=5e-3, rtol=5e-3), "state key mismatch"
    assert jnp.allclose(state_v, ref_v, atol=5e-3, rtol=5e-3), "state value mismatch"

    print("KERNEL_OK")
</pallas_src>

<mosaic_0001>
module attributes {stable_mosaic.version = 11 : i64} {
  func.func @fused_attention_kernel(%arg0: i32, %arg1: memref<1x8x32xf32, #tpu.memory_space<vmem>>, %arg2: memref<1x32xf32, #tpu.memory_space<vmem>>, %arg3: memref<1x32xf32, #tpu.memory_space<vmem>>, %arg4: memref<32x96xbf16, #tpu.memory_space<vmem>>, %arg5: memref<1x96xf32, #tpu.memory_space<vmem>>, %arg6: memref<1x8x32xf32, #tpu.memory_space<vmem>>, %arg7: memref<1x4x32xf32, #tpu.memory_space<vmem>>, %arg8: memref<1x4x32xf32, #tpu.memory_space<vmem>>) attributes {dimension_semantics = [#tpu.dimension_semantics<parallel>], iteration_bounds = array<i64: 2>, scalar_prefetch = 0 : i64, scratch_operands = 0 : i64, tpu.core_type = #tpu.core_type<tc>, window_params = [{transform_indices = @transform_0, window_bounds = array<i64: 1, 8, 32>}, {pipeline_mode = #tpu.pipeline_mode<synchronous>, transform_indices = @transform_1, window_bounds = array<i64: 1, 32>}, {pipeline_mode = #tpu.pipeline_mode<synchronous>, transform_indices = @transform_2, window_bounds = array<i64: 1, 32>}, {pipeline_mode = #tpu.pipeline_mode<synchronous>, transform_indices = @transform_3, window_bounds = array<i64: 32, 96>}, {pipeline_mode = #tpu.pipeline_mode<synchronous>, transform_indices = @transform_4, window_bounds = array<i64: 1, 96>}, {transform_indices = @transform_5, window_bounds = array<i64: 1, 8, 32>}, {transform_indices = @transform_6, window_bounds = array<i64: 1, 4, 32>}, {transform_indices = @transform_7, window_bounds = array<i64: 1, 4, 32>}]} {
    %c0 = arith.constant 0 : index
    %c0_0 = arith.constant 0 : index
    %c0_1 = arith.constant 0 : index
    %0 = vector.load %arg1[%c0, %c0_0, %c0_1] : memref<1x8x32xf32, #tpu.memory_space<vmem>>, vector<1x8x32xf32>
    %1 = vector.shape_cast %0 : vector<1x8x32xf32> to vector<8x32xf32>
    %cst = arith.constant dense<0.000000e+00> : vector<8xf32>
    %2 = vector.multi_reduction <add>, %1, %cst [1] : vector<8x32xf32> to vector<8xf32>
    %3 = vector.shape_cast %2 : vector<8xf32> to vector<8x1xf32>
    %cst_2 = arith.constant 3.200000e+01 : f32
    %4 = vector.broadcast %cst_2 : f32 to vector<8x1xf32>
    %5 = arith.divf %3, %4 : vector<8x1xf32>
    %6 = vector.broadcast %5 : vector<8x1xf32> to vector<8x32xf32>
    %7 = arith.subf %1, %6 : vector<8x32xf32>
    %8 = arith.mulf %7, %7 : vector<8x32xf32>
    %cst_3 = arith.constant dense<0.000000e+00> : vector<8xf32>
    %9 = vector.multi_reduction <add>, %8, %cst_3 [1] : vector<8x32xf32> to vector<8xf32>
    %10 = vector.shape_cast %9 : vector<8xf32> to vector<8x1xf32>
    %cst_4 = arith.constant 3.200000e+01 : f32
    %11 = vector.broadcast %cst_4 : f32 to vector<8x1xf32>
    %12 = arith.divf %10, %11 : vector<8x1xf32>
    %13 = vector.broadcast %5 : vector<8x1xf32> to vector<8x32xf32>
    %14 = arith.subf %1, %13 : vector<8x32xf32>
    %cst_5 = arith.constant 9.99999974E-6 : f32
    %15 = vector.broadcast %cst_5 : f32 to vector<8x1xf32>
    %16 = arith.addf %12, %15 : vector<8x1xf32>
    %17 = math.rsqrt %16 : vector<8x1xf32>
    %18 = vector.broadcast %17 : vector<8x1xf32> to vector<8x32xf32>
    %19 = arith.mulf %14, %18 : vector<8x32xf32>
    %c0_6 = arith.constant 0 : index
    %c0_7 = arith.constant 0 : index
    %20 = vector.load %arg2[%c0_6, %c0_7] : memref<1x32xf32, #tpu.memory_space<vmem>>, vector<1x32xf32>
    %21 = vector.broadcast %20 : vector<1x32xf32> to vector<8x32xf32>
    %22 = arith.mulf %19, %21 : vector<8x32xf32>
    %c0_8 = arith.constant 0 : index
    %c0_9 = arith.constant 0 : index
    %23 = vector.load %arg3[%c0_8, %c0_9] : memref<1x32xf32, #tpu.memory_space<vmem>>, vector<1x32xf32>
    %24 = vector.broadcast %23 : vector<1x32xf32> to vector<8x32xf32>
    %25 = arith.addf %22, %24 : vector<8x32xf32>
    %26 = arith.truncf %25 : vector<8x32xf32> to vector<8x32xbf16>
    %c0_10 = arith.constant 0 : index
    %c0_11 = arith.constant 0 : index
    %27 = vector.load %arg4[%c0_10, %c0_11] : memref<32x96xbf16, #tpu.memory_space<vmem>>, vector<32x96xbf16>
    %cst_12 = arith.constant dense<0.000000e+00> : vector<8x96xf32>
    %28 = tpu.matmul %26, %27, %cst_12 {dimension_numbers = #tpu.dot_dimension_numbers<[1], [0], [0], [1], [0, 0, 1, 1], [], []>} : vector<8x32xbf16>, vector<32x96xbf16>, vector<8x96xf32> -> vector<8x96xf32>
    %c0_13 = arith.constant 0 : index
    %c0_14 = arith.constant 0 : index
    %29 = vector.load %arg5[%c0_13, %c0_14] : memref<1x96xf32, #tpu.memory_space<vmem>>, vector<1x96xf32>
    %30 = vector.broadcast %29 : vector<1x96xf32> to vector<8x96xf32>
    %31 = arith.addf %28, %30 : vector<8x96xf32>
    %32 = tpu.iota {dimensions = array<i32: 0>} : vector<8x8xi32>
    %33 = tpu.iota {dimensions = array<i32: 1>} : vector<8x8xi32>
    %34 = arith.cmpi sle, %33, %32 : vector<8x8xi32>
    %35 = arith.subi %32, %33 : vector<8x8xi32>
    %c4_i32 = arith.constant 4 : i32
    %36 = vector.broadcast %c4_i32 : i32 to vector<8x8xi32>
    %37 = arith.cmpi slt, %35, %36 : vector<8x8xi32>
    %38 = arith.andi %34, %37 : vector<8x8xi1>
    %39 = vector.extract_strided_slice %31 {offsets = [4, 32], sizes = [4, 32], strides = [1, 1]} : vector<8x96xf32> to vector<4x32xf32>
    %c0_15 = arith.constant 0 : index
    %c0_16 = arith.constant 0 : index
    %c0_17 = arith.constant 0 : index
    %40 = vector.load %arg7[%c0_15, %c0_16, %c0_17] : memref<1x4x32xf32, #tpu.memory_space<vmem>>, vector<1x4x32xf32>
    %41 = vector.shape_cast %40 : vector<1x4x32xf32> to vector<4x32xf32>
    %42 = vector.shape_cast %39 : vector<4x32xf32> to vector<1x4x32xf32>
    tpu.vector_store %arg7[%c0_15, %c0_16, %c0_17], %42 {strides = array<i32>} : memref<1x4x32xf32, #tpu.memory_space<vmem>>, vector<1x4x32xf32>,
    %43 = vector.extract_strided_slice %31 {offsets = [4, 64], sizes = [4, 32], strides = [1, 1]} : vector<8x96xf32> to vector<4x32xf32>
    %c0_18 = arith.constant 0 : index
    %c0_19 = arith.constant 0 : index
    %c0_20 = arith.constant 0 : index
    %44 = vector.load %arg8[%c0_18, %c0_19, %c0_20] : memref<1x4x32xf32, #tpu.memory_space<vmem>>, vector<1x4x32xf32>
    %45 = vector.shape_cast %44 : vector<1x4x32xf32> to vector<4x32xf32>
    %46 = vector.shape_cast %43 : vector<4x32xf32> to vector<1x4x32xf32>
    tpu.vector_store %arg8[%c0_18, %c0_19, %c0_20], %46 {strides = array<i32>} : memref<1x4x32xf32, #tpu.memory_space<vmem>>, vector<1x4x32xf32>,
    %47 = vector.extract_strided_slice %31 {offsets = [0, 0], sizes = [8, 8], strides = [1, 1]} : vector<8x96xf32> to vector<8x8xf32>
    %cst_21 = arith.constant 0.353553385 : f32
    %48 = vector.broadcast %cst_21 : f32 to vector<8x8xf32>
    %49 = arith.mulf %47, %48 : vector<8x8xf32>
    %50 = arith.truncf %49 : vector<8x8xf32> to vector<8x8xbf16>
    %51 = vector.extract_strided_slice %31 {offsets = [0, 32], sizes = [8, 8], strides = [1, 1]} : vector<8x96xf32> to vector<8x8xf32>
    %52 = arith.truncf %51 : vector<8x8xf32> to vector<8x8xbf16>
    %53 = vector.extract_strided_slice %31 {offsets = [0, 64], sizes = [8, 8], strides = [1, 1]} : vector<8x96xf32> to vector<8x8xf32>
    %54 = arith.truncf %53 : vector<8x8xf32> to vector<8x8xbf16>
    %cst_22 = arith.constant dense<0.000000e+00> : vector<8x8xf32>
    %55 = tpu.matmul %50, %52, %cst_22 {dimension_numbers = #tpu.dot_dimension_numbers<[1], [1], [0], [0], [0, 0, 1, 0], [], []>} : vector<8x8xbf16>, vector<8x8xbf16>, vector<8x8xf32> -> vector<8x8xf32>
    %cst_23 = arith.constant -1.000000e+30 : f32
    %56 = vector.broadcast %cst_23 : f32 to vector<8x8xf32>
    %57 = arith.select %38, %55, %56 : vector<8x8xi1>, vector<8x8xf32>
    %cst_24 = arith.constant dense<0xFF800000> : vector<8xf32>
    %58 = vector.multi_reduction <maximumf>, %57, %cst_24 [1] : vector<8x8xf32> to vector<8xf32>
    %59 = vector.shape_cast %58 : vector<8xf32> to vector<8x1xf32>
    %60 = vector.broadcast %59 : vector<8x1xf32> to vector<8x8xf32>
    %61 = arith.subf %57, %60 : vector<8x8xf32>
    %62 = math.exp %61 : vector<8x8xf32>
    %cst_25 = arith.constant dense<0.000000e+00> : vector<8xf32>
    %63 = vector.multi_reduction <add>, %62, %cst_25 [1] : vector<8x8xf32> to vector<8xf32>
    %64 = vector.shape_cast %63 : vector<8xf32> to vector<8x1xf32>
    %65 = arith.truncf %62 : vector<8x8xf32> to vector<8x8xbf16>
    %cst_26 = arith.constant dense<0.000000e+00> : vector<8x8xf32>
    %66 = tpu.matmul %65, %54, %cst_26 {dimension_numbers = #tpu.dot_dimension_numbers<[1], [0], [0], [1], [0, 0, 1, 1], [], []>} : vector<8x8xbf16>, vector<8x8xbf16>, vector<8x8xf32> -> vector<8x8xf32>
    %cst_27 = arith.constant 1.000000e+00 : f32
    %67 = vector.broadcast %cst_27 : f32 to vector<8x1xf32>
    %68 = arith.divf %67, %64 : vector<8x1xf32>
    %69 = vector.broadcast %68 : vector<8x1xf32> to vector<8x8xf32>
    %70 = arith.mulf %66, %69 : vector<8x8xf32>
    %c0_28 = arith.constant 0 : index
    %c0_29 = arith.constant 0 : index
    %c0_30 = arith.constant 0 : index
    %71 = vector.load %arg6[%c0_28, %c0_29, %c0_30] : memref<1x8x32xf32, #tpu.memory_space<vmem>>, vector<1x8x8xf32>
    %72 = vector.shape_cast %71 : vector<1x8x8xf32> to vector<8x8xf32>
    %73 = vector.shape_cast %70 : vector<8x8xf32> to vector<1x8x8xf32>
    tpu.vector_store %arg6[%c0_28, %c0_29, %c0_30], %73 {strides = array<i32>} : memref<1x8x32xf32, #tpu.memory_space<vmem>>, vector<1x8x8xf32>,
    %74 = vector.extract_strided_slice %31 {offsets = [0, 8], sizes = [8, 8], strides = [1, 1]} : vector<8x96xf32> to vector<8x8xf32>
    %cst_31 = arith.constant 0.353553385 : f32
    %75 = vector.broadcast %cst_31 : f32 to vector<8x8xf32>
    %76 = arith.mulf %74, %75 : vector<8x8xf32>
    %77 = arith.truncf %76 : vector<8x8xf32> to vector<8x8xbf16>
    %78 = vector.extract_strided_slice %31 {offsets = [0, 40], sizes = [8, 8], strides = [1, 1]} : vector<8x96xf32> to vector<8x8xf32>
    %79 = arith.truncf %78 : vector<8x8xf32> to vector<8x8xbf16>
    %80 = vector.extract_strided_slice %31 {offsets = [0, 72], sizes = [8, 8], strides = [1, 1]} : vector<8x96xf32> to vector<8x8xf32>
    %81 = arith.truncf %80 : vector<8x8xf32> to vector<8x8xbf16>
    %cst_32 = arith.constant dense<0.000000e+00> : vector<8x8xf32>
    %82 = tpu.matmul %77, %79, %cst_32 {dimension_numbers = #tpu.dot_dimension_numbers<[1], [1], [0], [0], [0, 0, 1, 0], [], []>} : vector<8x8xbf16>, vector<8x8xbf16>, vector<8x8xf32> -> vector<8x8xf32>
    %cst_33 = arith.constant -1.000000e+30 : f32
    %83 = vector.broadcast %cst_33 : f32 to vector<8x8xf32>
    %84 = arith.select %38, %82, %83 : vector<8x8xi1>, vector<8x8xf32>
    %cst_34 = arith.constant dense<0xFF800000> : vector<8xf32>
    %85 = vector.multi_reduction <maximumf>, %84, %cst_34 [1] : vector<8x8xf32> to vector<8xf32>
    %86 = vector.shape_cast %85 : vector<8xf32> to vector<8x1xf32>
    %87 = vector.broadcast %86 : vector<8x1xf32> to vector<8x8xf32>
    %88 = arith.subf %84, %87 : vector<8x8xf32>
    %89 = math.exp %88 : vector<8x8xf32>
    %cst_35 = arith.constant dense<0.000000e+00> : vector<8xf32>
    %90 = vector.multi_reduction <add>, %89, %cst_35 [1] : vector<8x8xf32> to vector<8xf32>
    %91 = vector.shape_cast %90 : vector<8xf32> to vector<8x1xf32>
    %92 = arith.truncf %89 : vector<8x8xf32> to vector<8x8xbf16>
    %cst_36 = arith.constant dense<0.000000e+00> : vector<8x8xf32>
    %93 = tpu.matmul %92, %81, %cst_36 {dimension_numbers = #tpu.dot_dimension_numbers<[1], [0], [0], [1], [0, 0, 1, 1], [], []>} : vector<8x8xbf16>, vector<8x8xbf16>, vector<8x8xf32> -> vector<8x8xf32>
    %cst_37 = arith.constant 1.000000e+00 : f32
    %94 = vector.broadcast %cst_37 : f32 to vector<8x1xf32>
    %95 = arith.divf %94, %91 : vector<8x1xf32>
    %96 = vector.broadcast %95 : vector<8x1xf32> to vector<8x8xf32>
    %97 = arith.mulf %93, %96 : vector<8x8xf32>
    %c0_38 = arith.constant 0 : index
    %c0_39 = arith.constant 0 : index
    %c8 = arith.constant 8 : index
    %98 = vector.load %arg6[%c0_38, %c0_39, %c8] : memref<1x8x32xf32, #tpu.memory_space<vmem>>, vector<1x8x8xf32>
    %99 = vector.shape_cast %98 : vector<1x8x8xf32> to vector<8x8xf32>
    %100 = vector.shape_cast %97 : vector<8x8xf32> to vector<1x8x8xf32>
    tpu.vector_store %arg6[%c0_38, %c0_39, %c8], %100 {strides = array<i32>} : memref<1x8x32xf32, #tpu.memory_space<vmem>>, vector<1x8x8xf32>,
    %101 = vector.extract_strided_slice %31 {offsets = [0, 16], sizes = [8, 8], strides = [1, 1]} : vector<8x96xf32> to vector<8x8xf32>
    %cst_40 = arith.constant 0.353553385 : f32
    %102 = vector.broadcast %cst_40 : f32 to vector<8x8xf32>
    %103 = arith.mulf %101, %102 : vector<8x8xf32>
    %104 = arith.truncf %103 : vector<8x8xf32> to vector<8x8xbf16>
    %105 = vector.extract_strided_slice %31 {offsets = [0, 48], sizes = [8, 8], strides = [1, 1]} : vector<8x96xf32> to vector<8x8xf32>
    %106 = arith.truncf %105 : vector<8x8xf32> to vector<8x8xbf16>
    %107 = vector.extract_strided_slice %31 {offsets = [0, 80], sizes = [8, 8], strides = [1, 1]} : vector<8x96xf32> to vector<8x8xf32>
    %108 = arith.truncf %107 : vector<8x8xf32> to vector<8x8xbf16>
    %cst_41 = arith.constant dense<0.000000e+00> : vector<8x8xf32>
    %109 = tpu.matmul %104, %106, %cst_41 {dimension_numbers = #tpu.dot_dimension_numbers<[1], [1], [0], [0], [0, 0, 1, 0], [], []>} : vector<8x8xbf16>, vector<8x8xbf16>, vector<8x8xf32> -> vector<8x8xf32>
    %cst_42 = arith.constant -1.000000e+30 : f32
    %110 = vector.broadcast %cst_42 : f32 to vector<8x8xf32>
    %111 = arith.select %38, %109, %110 : vector<8x8xi1>, vector<8x8xf32>
    %cst_43 = arith.constant dense<0xFF800000> : vector<8xf32>
    %112 = vector.multi_reduction <maximumf>, %111, %cst_43 [1] : vector<8x8xf32> to vector<8xf32>
    %113 = vector.shape_cast %112 : vector<8xf32> to vector<8x1xf32>
    %114 = vector.broadcast %113 : vector<8x1xf32> to vector<8x8xf32>
    %115 = arith.subf %111, %114 : vector<8x8xf32>
    %116 = math.exp %115 : vector<8x8xf32>
    %cst_44 = arith.constant dense<0.000000e+00> : vector<8xf32>
    %117 = vector.multi_reduction <add>, %116, %cst_44 [1] : vector<8x8xf32> to vector<8xf32>
    %118 = vector.shape_cast %117 : vector<8xf32> to vector<8x1xf32>
    %119 = arith.truncf %116 : vector<8x8xf32> to vector<8x8xbf16>
    %cst_45 = arith.constant dense<0.000000e+00> : vector<8x8xf32>
    %120 = tpu.matmul %119, %108, %cst_45 {dimension_numbers = #tpu.dot_dimension_numbers<[1], [0], [0], [1], [0, 0, 1, 1], [], []>} : vector<8x8xbf16>, vector<8x8xbf16>, vector<8x8xf32> -> vector<8x8xf32>
    %cst_46 = arith.constant 1.000000e+00 : f32
    %121 = vector.broadcast %cst_46 : f32 to vector<8x1xf32>
    %122 = arith.divf %121, %118 : vector<8x1xf32>
    %123 = vector.broadcast %122 : vector<8x1xf32> to vector<8x8xf32>
    %124 = arith.mulf %120, %123 : vector<8x8xf32>
    %c0_47 = arith.constant 0 : index
    %c0_48 = arith.constant 0 : index
    %c16 = arith.constant 16 : index
    %125 = vector.load %arg6[%c0_47, %c0_48, %c16] : memref<1x8x32xf32, #tpu.memory_space<vmem>>, vector<1x8x8xf32>
    %126 = vector.shape_cast %125 : vector<1x8x8xf32> to vector<8x8xf32>
    %127 = vector.shape_cast %124 : vector<8x8xf32> to vector<1x8x8xf32>
    tpu.vector_store %arg6[%c0_47, %c0_48, %c16], %127 {strides = array<i32>} : memref<1x8x32xf32, #tpu.memory_space<vmem>>, vector<1x8x8xf32>,
    %128 = vector.extract_strided_slice %31 {offsets = [0, 24], sizes = [8, 8], strides = [1, 1]} : vector<8x96xf32> to vector<8x8xf32>
    %cst_49 = arith.constant 0.353553385 : f32
    %129 = vector.broadcast %cst_49 : f32 to vector<8x8xf32>
    %130 = arith.mulf %128, %129 : vector<8x8xf32>
    %131 = arith.truncf %130 : vector<8x8xf32> to vector<8x8xbf16>
    %132 = vector.extract_strided_slice %31 {offsets = [0, 56], sizes = [8, 8], strides = [1, 1]} : vector<8x96xf32> to vector<8x8xf32>
    %133 = arith.truncf %132 : vector<8x8xf32> to vector<8x8xbf16>
    %134 = vector.extract_strided_slice %31 {offsets = [0, 88], sizes = [8, 8], strides = [1, 1]} : vector<8x96xf32> to vector<8x8xf32>
    %135 = arith.truncf %134 : vector<8x8xf32> to vector<8x8xbf16>
    %cst_50 = arith.constant dense<0.000000e+00> : vector<8x8xf32>
    %136 = tpu.matmul %131, %133, %cst_50 {dimension_numbers = #tpu.dot_dimension_numbers<[1], [1], [0], [0], [0, 0, 1, 0], [], []>} : vector<8x8xbf16>, vector<8x8xbf16>, vector<8x8xf32> -> vector<8x8xf32>
    %cst_51 = arith.constant -1.000000e+30 : f32
    %137 = vector.broadcast %cst_51 : f32 to vector<8x8xf32>
    %138 = arith.select %38, %136, %137 : vector<8x8xi1>, vector<8x8xf32>
    %cst_52 = arith.constant dense<0xFF800000> : vector<8xf32>
    %139 = vector.multi_reduction <maximumf>, %138, %cst_52 [1] : vector<8x8xf32> to vector<8xf32>
    %140 = vector.shape_cast %139 : vector<8xf32> to vector<8x1xf32>
    %141 = vector.broadcast %140 : vector<8x1xf32> to vector<8x8xf32>
    %142 = arith.subf %138, %141 : vector<8x8xf32>
    %143 = math.exp %142 : vector<8x8xf32>
    %cst_53 = arith.constant dense<0.000000e+00> : vector<8xf32>
    %144 = vector.multi_reduction <add>, %143, %cst_53 [1] : vector<8x8xf32> to vector<8xf32>
    %145 = vector.shape_cast %144 : vector<8xf32> to vector<8x1xf32>
    %146 = arith.truncf %143 : vector<8x8xf32> to vector<8x8xbf16>
    %cst_54 = arith.constant dense<0.000000e+00> : vector<8x8xf32>
    %147 = tpu.matmul %146, %135, %cst_54 {dimension_numbers = #tpu.dot_dimension_numbers<[1], [0], [0], [1], [0, 0, 1, 1], [], []>} : vector<8x8xbf16>, vector<8x8xbf16>, vector<8x8xf32> -> vector<8x8xf32>
    %cst_55 = arith.constant 1.000000e+00 : f32
    %148 = vector.broadcast %cst_55 : f32 to vector<8x1xf32>
    %149 = arith.divf %148, %145 : vector<8x1xf32>
    %150 = vector.broadcast %149 : vector<8x1xf32> to vector<8x8xf32>
    %151 = arith.mulf %147, %150 : vector<8x8xf32>
    %c0_56 = arith.constant 0 : index
    %c0_57 = arith.constant 0 : index
    %c24 = arith.constant 24 : index
    %152 = vector.load %arg6[%c0_56, %c0_57, %c24] : memref<1x8x32xf32, #tpu.memory_space<vmem>>, vector<1x8x8xf32>
    %153 = vector.shape_cast %152 : vector<1x8x8xf32> to vector<8x8xf32>
    %154 = vector.shape_cast %151 : vector<8x8xf32> to vector<1x8x8xf32>
    tpu.vector_store %arg6[%c0_56, %c0_57, %c24], %154 {strides = array<i32>} : memref<1x8x32xf32, #tpu.memory_space<vmem>>, vector<1x8x8xf32>,
    return
  }
  func.func @transform_0(%arg0: i32) -> (i32, i32, i32) {
    %c0_i32 = arith.constant 0 : i32
    %c0_i32_0 = arith.constant 0 : i32
    %c0_i32_1 = arith.constant 0 : i32
    return %arg0, %c0_i32, %c0_i32_0 : i32, i32, i32
  }
  func.func @transform_1(%arg0: i32) -> (i32, i32) {
    %c0_i32 = arith.constant 0 : i32
    %c0_i32_0 = arith.constant 0 : i32
    %c0_i32_1 = arith.constant 0 : i32
    return %c0_i32, %c0_i32_0 : i32, i32
  }
  func.func @transform_2(%arg0: i32) -> (i32, i32) {
    %c0_i32 = arith.constant 0 : i32
    %c0_i32_0 = arith.constant 0 : i32
    %c0_i32_1 = arith.constant 0 : i32
    return %c0_i32, %c0_i32_0 : i32, i32
  }
  func.func @transform_3(%arg0: i32) -> (i32, i32) {
    %c0_i32 = arith.constant 0 : i32
    %c0_i32_0 = arith.constant 0 : i32
    %c0_i32_1 = arith.constant 0 : i32
    return %c0_i32, %c0_i32_0 : i32, i32
  }
  func.func @transform_4(%arg0: i32) -> (i32, i32) {
    %c0_i32 = arith.constant 0 : i32
    %c0_i32_0 = arith.constant 0 : i32
    %c0_i32_1 = arith.constant 0 : i32
    return %c0_i32, %c0_i32_0 : i32, i32
  }
  func.func @transform_5(%arg0: i32) -> (i32, i32, i32) {
    %c0_i32 = arith.constant 0 : i32
    %c0_i32_0 = arith.constant 0 : i32
    %c0_i32_1 = arith.constant 0 : i32
    return %arg0, %c0_i32, %c0_i32_0 : i32, i32, i32
  }
  func.func @transform_6(%arg0: i32) -> (i32, i32, i32) {
    %c0_i32 = arith.constant 0 : i32
    %c0_i32_0 = arith.constant 0 : i32
    %c0_i32_1 = arith.constant 0 : i32
    return %arg0, %c0_i32, %c0_i32_0 : i32, i32, i32
  }
  func.func @transform_7(%arg0: i32) -> (i32, i32, i32) {
    %c0_i32 = arith.constant 0 : i32
    %c0_i32_0 = arith.constant 0 : i32
    %c0_i32_1 = arith.constant 0 : i32
    return %arg0, %c0_i32, %c0_i32_0 : i32, i32, i32
  }
}

</mosaic_0001>

<llo_original>
// kernel: tpu_custom_call.1
$region0: #{tpu_custom_call.1}
  #allocation0 [shape = 'u32[]', space=smem, size = 0x4, offset = 0x4, fixed_abs, tag = 'smem constant byte address 0x4 - core index']
  #allocation1 [shape = 'u32[144,128]{1,0:T(1,128)}', space=vmem, size = 0x12000, scoped, tag = 'internal scratch']
  %s0 = inlined_call_operand.hbm [shape: f32[2,8,32], index: 0, kind: input, shape index: {}]
  %s1 = inlined_call_operand.vmem [shape: f32[1,32], index: 1, kind: input, shape index: {}]
  %s2 = inlined_call_operand.vmem [shape: f32[1,32], index: 2, kind: input, shape index: {}]
  %s3 = inlined_call_operand.hbm [shape: bf16[32,96], index: 3, kind: input, shape index: {}]
  %s4 = inlined_call_operand.vmem [shape: f32[1,96], index: 4, kind: input, shape index: {}]
  %s5 = inlined_call_operand.hbm [shape: f32[2,8,32], index: 5, kind: output, shape index: {0}]
  %s6 = inlined_call_operand.hbm [shape: f32[2,4,32], index: 6, kind: output, shape index: {1}]
  %s7 = inlined_call_operand.hbm [shape: f32[2,4,32], index: 7, kind: output, shape index: {2}]
  %8 = xla_tuple %s5, %s6, %s7
  %s9 = sld [smem:[#allocation0]]
  $region77: #{tpu_custom_call.1} parent=0
    _
  %s11 = ssub.s32 1, %s9
  %s12 = scalar_select 0, %s11, %s9
  $region1: #{tpu_custom_call.1} parent=0
    #allocation2 [shape = 'u8[8192]{0}', space=vmem, size = 0x2000, scoped, tag = 'input window, operand 0']
    #allocation3 [shape = 's32[2]{0}', space=sflag, size = 0x8, scoped, tag = 'scoped memory for tpu_custom_call.1']
    #allocation4 [shape = 's32[2]{0}', space=sflag, size = 0x8, scoped, tag = 'scoped memory for tpu_custom_call.1']
    #allocation5 [shape = 'u8[8192]{0}', space=vmem, size = 0x2000, scoped, tag = 'input window, operand 3, single buffered']
    #allocation6 [shape = 's32[1]{0}', space=sflag, size = 0x4, scoped, tag = 'scoped memory for tpu_custom_call.1']
    #allocation7 [shape = 'u8[8192]{0}', space=vmem, size = 0x2000, scoped, tag = 'output window, operand 0']
    #allocation8 [shape = 'u8[4096]{0}', space=vmem, size = 0x1000, scoped, tag = 'output window, operand 1']
    #allocation9 [shape = 's32[2]{0}', space=sflag, size = 0x8, scoped, tag = 'scoped memory for tpu_custom_call.1']
    #allocation10 [shape = 'u8[4096]{0}', space=vmem, size = 0x1000, scoped, tag = 'output window, operand 2']
    %13 = vsyncpa [#allocation3], 0
    %s14 = scalar_lea.sflag [#allocation3], 1
    %15 = vsyncpa %s14, 0
    %16 = vsyncpa [#allocation6], 0
    %17 = vsyncpa [#allocation4], 0
    %s18 = scalar_lea.sflag [#allocation4], 1
    %19 = vsyncpa %s18, 0
    %20 = vsyncpa [#allocation9], 0
    %s21 = scalar_lea.sflag [#allocation9], 1
    %22 = vsyncpa %s21, 0
    loop: start=0, step=1, limit=4
    $region2: #{tpu_custom_call.1} parent=1 // loop_pre_header
      _
    $region3: #{tpu_custom_call.1} parent=1 // loop_header
      %s24 = sphi 0, %s28
      %p25 = scmp.ge.s32.totalorder %s24, 4
      %s34 = sphi 0, %s36
      %s37 = sphi 0, %s34
      %s38 = sphi 0, %s37
      %s54 = sphi 0, %s38
      %s58 = sphi 0, %s58
      %s60 = sphi 0, %s58
      %s61 = sphi 0, %s60
      %s75 = sphi 0, %s61
      %s79 = sphi 0, %s79
      %s81 = sphi 0, %s79
      %s82 = sphi 0, %s81
      %s96 = sphi 0, %s82
      %s100 = sphi 0, %s100
      %s102 = sphi 0, %s100
      %s103 = sphi 0, %s102
      %s117 = sphi 0, %s103
      %s121 = sphi 0, %s121
      %s123 = sphi 0, %s121
      %s124 = sphi 0, %s123
      %s138 = sphi 0, %s124
      %s144 = sphi 0, %s146
      %s147 = sphi 0, %s144
      %s148 = sphi 0, %s147
      %s164 = sphi 0, %s148
      %s170 = sphi 0, %s172
      %s173 = sphi 0, %s170
      %s174 = sphi 0, %s173
      %s190 = sphi 0, %s174
      %s196 = sphi 0, %s198
      %s199 = sphi 0, %s196
      %s200 = sphi 0, %s199
      %s216 = sphi 0, %s200
    $region4: #{tpu_custom_call.1} parent=1 // loop_header_branch
      %27 = sbr.rel (%p25) target = $region8
    $region5: #{tpu_custom_call.1} parent=1 // loop_body
      %s29 = ssub.s32 %s24, 1
      %s30 = ssub.s32 %s24, 2
      %s31 = sadd.s32 %s24, 1
      %s32 = ssub.s32 %s24, %s31
      %p33 = scmp.eq.s32.totalorder %s32, 0
      %s35 = sadd.s32 %s34, 1
      %s36 = scalar_select %p33, %s34, %s35
      %p39 = pneg %p33
      %p40 = scmp.eq.s32.totalorder %s24, 1
      %p41 = por %p39, %p40
      %p42 = scmp.ne.s32.totalorder %s34, %s37
      %p43 = scmp.eq.s32.totalorder %s24, 0
      %p44 = por %p42, %p43
      %p45 = scmp.ne.s32.totalorder %s34, %s37
      %p46 = scmp.eq.s32.totalorder %s29, 1
      %p47 = por %p45, %p46
      %p48 = scmp.ne.s32.totalorder %s37, %s38
      %p49 = scmp.eq.s32.totalorder %s29, 0
      %p50 = por %p48, %p49
      %p51 = scmp.ne.s32.totalorder %s37, %s38
      %p52 = scmp.eq.s32.totalorder %s30, 1
      %p53 = por %p51, %p52
      %p55 = scmp.ne.s32.totalorder %s38, %s54
      %p56 = scmp.eq.s32.totalorder %s30, 0
      %p57 = por %p55, %p56
      %s59 = sadd.s32 %s58, 1
      %p62 = scmp.eq.s32.totalorder %s24, 1
      %p63 = scmp.ne.s32.totalorder %s58, %s60
      %p64 = scmp.eq.s32.totalorder %s24, 0
      %p65 = por %p63, %p64
      %p66 = scmp.ne.s32.totalorder %s58, %s60
      %p67 = scmp.eq.s32.totalorder %s29, 1
      %p68 = por %p66, %p67
      %p69 = scmp.ne.s32.totalorder %s60, %s61
      %p70 = scmp.eq.s32.totalorder %s29, 0
      %p71 = por %p69, %p70
      %p72 = scmp.ne.s32.totalorder %s60, %s61
      %p73 = scmp.eq.s32.totalorder %s30, 1
      %p74 = por %p72, %p73
      %p76 = scmp.ne.s32.totalorder %s61, %s75
      %p77 = scmp.eq.s32.totalorder %s30, 0
      %p78 = por %p76, %p77
      %s80 = sadd.s32 %s79, 1
      %p83 = scmp.eq.s32.totalorder %s24, 1
      %p84 = scmp.ne.s32.totalorder %s79, %s81
      %p85 = scmp.eq.s32.totalorder %s24, 0
      %p86 = por %p84, %p85
      %p87 = scmp.ne.s32.totalorder %s79, %s81
      %p88 = scmp.eq.s32.totalorder %s29, 1
      %p89 = por %p87, %p88
      %p90 = scmp.ne.s32.totalorder %s81, %s82
      %p91 = scmp.eq.s32.totalorder %s29, 0
      %p92 = por %p90, %p91
      %p93 = scmp.ne.s32.totalorder %s81, %s82
      %p94 = scmp.eq.s32.totalorder %s30, 1
      %p95 = por %p93, %p94
      %p97 = scmp.ne.s32.totalorder %s82, %s96
      %p98 = scmp.eq.s32.totalorder %s30, 0
      %p99 = por %p97, %p98
      %s101 = sadd.s32 %s100, 1
      %p104 = scmp.eq.s32.totalorder %s24, 1
      %p105 = scmp.ne.s32.totalorder %s100, %s102
      %p106 = scmp.eq.s32.totalorder %s24, 0
      %p107 = por %p105, %p106
      %p108 = scmp.ne.s32.totalorder %s100, %s102
      %p109 = scmp.eq.s32.totalorder %s29, 1
      %p110 = por %p108, %p109
      %p111 = scmp.ne.s32.totalorder %s102, %s103
      %p112 = scmp.eq.s32.totalorder %s29, 0
      %p113 = por %p111, %p112
      %p114 = scmp.ne.s32.totalorder %s102, %s103
      %p115 = scmp.eq.s32.totalorder %s30, 1
      %p116 = por %p114, %p115
      %p118 = scmp.ne.s32.totalorder %s103, %s117
      %p119 = scmp.eq.s32.totalorder %s30, 0
      %p120 = por %p118, %p119
      %s122 = sadd.s32 %s121, 1
      %p125 = scmp.eq.s32.totalorder %s24, 1
      %p126 = scmp.ne.s32.totalorder %s121, %s123
      %p127 = scmp.eq.s32.totalorder %s24, 0
      %p128 = por %p126, %p127
      %p129 = scmp.ne.s32.totalorder %s121, %s123
      %p130 = scmp.eq.s32.totalorder %s29, 1
      %p131 = por %p129, %p130
      %p132 = scmp.ne.s32.totalorder %s123, %s124
      %p133 = scmp.eq.s32.totalorder %s29, 0
      %p134 = por %p132, %p133
      %p135 = scmp.ne.s32.totalorder %s123, %s124
      %p136 = scmp.eq.s32.totalorder %s30, 1
      %p137 = por %p135, %p136
      %p139 = scmp.ne.s32.totalorder %s124, %s138
      %p140 = scmp.eq.s32.totalorder %s30, 0
      %p141 = por %p139, %p140
      %s142 = ssub.s32 %s24, %s31
      %p143 = scmp.eq.s32.totalorder %s142, 0
      %s145 = sadd.s32 %s144, 1
      %s146 = scalar_select %p143, %s144, %s145
      %p149 = pneg %p143
      %p150 = scmp.eq.s32.totalorder %s24, 1
      %p151 = por %p149, %p150
      %p152 = scmp.ne.s32.totalorder %s144, %s147
      %p153 = scmp.eq.s32.totalorder %s24, 0
      %p154 = por %p152, %p153
      %p155 = scmp.ne.s32.totalorder %s144, %s147
      %p156 = scmp.eq.s32.totalorder %s29, 1
      %p157 = por %p155, %p156
      %p158 = scmp.ne.s32.totalorder %s147, %s148
      %p159 = scmp.eq.s32.totalorder %s29, 0
      %p160 = por %p158, %p159
      %p161 = scmp.ne.s32.totalorder %s147, %s148
      %p162 = scmp.eq.s32.totalorder %s30, 1
      %p163 = por %p161, %p162
      %p165 = scmp.ne.s32.totalorder %s148, %s164
      %p166 = scmp.eq.s32.totalorder %s30, 0
      %p167 = por %p165, %p166
      %s168 = ssub.s32 %s24, %s31
      %p169 = scmp.eq.s32.totalorder %s168, 0
      %s171 = sadd.s32 %s170, 1
      %s172 = scalar_select %p169, %s170, %s171
      %p175 = pneg %p169
      %p176 = scmp.eq.s32.totalorder %s24, 1
      %p177 = por %p175, %p176
      %p178 = scmp.ne.s32.totalorder %s170, %s173
      %p179 = scmp.eq.s32.totalorder %s24, 0
      %p180 = por %p178, %p179
      %p181 = scmp.ne.s32.totalorder %s170, %s173
      %p182 = scmp.eq.s32.totalorder %s29, 1
      %p183 = por %p181, %p182
      %p184 = scmp.ne.s32.totalorder %s173, %s174
      %p185 = scmp.eq.s32.totalorder %s29, 0
      %p186 = por %p184, %p185
      %p187 = scmp.ne.s32.totalorder %s173, %s174
      %p188 = scmp.eq.s32.totalorder %s30, 1
      %p189 = por %p187, %p188
      %p191 = scmp.ne.s32.totalorder %s174, %s190
      %p192 = scmp.eq.s32.totalorder %s30, 0
      %p193 = por %p191, %p192
      %s194 = ssub.s32 %s24, %s31
      %p195 = scmp.eq.s32.totalorder %s194, 0
      %s197 = sadd.s32 %s196, 1
      %s198 = scalar_select %p195, %s196, %s197
      %p201 = pneg %p195
      %p202 = scmp.eq.s32.totalorder %s24, 1
      %p203 = por %p201, %p202
      %p204 = scmp.ne.s32.totalorder %s196, %s199
      %p205 = scmp.eq.s32.totalorder %s24, 0
      %p206 = por %p204, %p205
      %p207 = scmp.ne.s32.totalorder %s196, %s199
      %p208 = scmp.eq.s32.totalorder %s29, 1
      %p209 = por %p207, %p208
      %p210 = scmp.ne.s32.totalorder %s199, %s200
      %p211 = scmp.eq.s32.totalorder %s29, 0
      %p212 = por %p210, %p211
      %p213 = scmp.ne.s32.totalorder %s199, %s200
      %p214 = scmp.eq.s32.totalorder %s30, 1
      %p215 = por %p213, %p214
      %p217 = scmp.ne.s32.totalorder %s200, %s216
      %p218 = scmp.eq.s32.totalorder %s30, 0
      %p219 = por %p217, %p218
      %p220 = scmp.le.s32.totalorder 1, %s24
      %p221 = scmp.lt.s32.totalorder %s24, 3
      %p222 = pnand %p220, %p221
      %p223 = pneg %p222
      // Predicated region
      $region9: #{tpu_custom_call.1} parent=5 // pred_check
        _
      $region10: #{tpu_custom_call.1} parent=5 // pred_check_branch
        %225 = sbr.rel (%p222) target = $region12
      $region11: #{tpu_custom_call.1} parent=5 // pred_region
        %s226 = ssub.s32 %s24, 1
        // Predicated region
        $region13: #{tpu_custom_call.1} parent=11 // pred_check
          %p227 = pneg %p71
        $region14: #{tpu_custom_call.1} parent=11 // pred_check_branch
          %229 = sbr.rel (%p227) target = $region16
        $region15: #{tpu_custom_call.1} parent=11 // pred_region
          _
        $region16: #{tpu_custom_call.1} parent=11 // pred_fallthru
          _
        // Predicated region
        $region17: #{tpu_custom_call.1} parent=11 // pred_check
          %p230 = pneg %p92
        $region18: #{tpu_custom_call.1} parent=11 // pred_check_branch
          %232 = sbr.rel (%p230) target = $region20
        $region19: #{tpu_custom_call.1} parent=11 // pred_region
          _
        $region20: #{tpu_custom_call.1} parent=11 // pred_fallthru
          _
        // Predicated region
        $region21: #{tpu_custom_call.1} parent=11 // pred_check
          %p233 = pneg %p113
        $region22: #{tpu_custom_call.1} parent=11 // pred_check_branch
          %235 = sbr.rel (%p233) target = $region24
        $region23: #{tpu_custom_call.1} parent=11 // pred_region
          %s237 = ssub.s32 256, 256
          %238 = vsyncadd [#allocation6], %s237
          %s239 = sshll.u32 [#allocation5], 4
          %s240 = int_to_ptr.vmem [resolvable:$true] %s239
          %245 = dma.hbm_to_vmem [thread:$0]  %s3, 256, %s240, [#allocation6], 64, 64, 4
        $region24: #{tpu_custom_call.1} parent=11 // pred_fallthru
          _
        // Predicated region
        $region25: #{tpu_custom_call.1} parent=11 // pred_check
          %p246 = pneg %p134
        $region26: #{tpu_custom_call.1} parent=11 // pred_check_branch
          %248 = sbr.rel (%p246) target = $region28
        $region27: #{tpu_custom_call.1} parent=11 // pred_region
          _
        $region28: #{tpu_custom_call.1} parent=11 // pred_fallthru
          _
      $region12: #{tpu_custom_call.1} parent=5 // pred_fallthru
        _
      %p249 = scmp.lt.s32.totalorder %s24, 2
      // Predicated region
      $region29: #{tpu_custom_call.1} parent=5 // pred_check
        %p250 = pneg %p249
      $region30: #{tpu_custom_call.1} parent=5 // pred_check_branch
        %252 = sbr.rel (%p250) target = $region32
      $region31: #{tpu_custom_call.1} parent=5 // pred_region
        // Predicated region
        $region33: #{tpu_custom_call.1} parent=31 // pred_check
          %p253 = pneg %p44
        $region34: #{tpu_custom_call.1} parent=31 // pred_check_branch
          %255 = sbr.rel (%p253) target = $region36
        $region35: #{tpu_custom_call.1} parent=31 // pred_region
          %s256 = sand.u32 %s34, 1
          %s257 = scalar_lea.sflag [#allocation3], %s256
          %s258 = sand.u32 %s34, 1
          %s259 = smul.addr %s258, 8
          %s260 = scalar_lea.vmem [#allocation2], %s259
          %s262 = ssub.s32 128, 128
          %263 = vsyncadd %s257, %s262
          %s264 = smul.addr %s24, 128
          %s265 = scalar_lea.hbm %s0, %s264
          %s267 = sshll.u32 %s260, 4
          %s268 = int_to_ptr.vmem [resolvable:$true] %s267
          %270 = dma.hbm_to_vmem [thread:$0]  %s265, 128, %s268, %s257
        $region36: #{tpu_custom_call.1} parent=31 // pred_fallthru
          _
      $region32: #{tpu_custom_call.1} parent=5 // pred_fallthru
        _
      %p271 = scmp.le.s32.totalorder 1, %s24
      %p272 = scmp.lt.s32.totalorder %s24, 3
      %p273 = pnand %p271, %p272
      %p274 = pneg %p273
      // Predicated region
      $region37: #{tpu_custom_call.1} parent=5 // pred_check
        _
      $region38: #{tpu_custom_call.1} parent=5 // pred_check_branch
        %276 = sbr.rel (%p273) target = $region40
      $region39: #{tpu_custom_call.1} parent=5 // pred_region
        %s277 = ssub.s32 %s24, 1
        %s278 = sand.u32 %s37, 1
        %s279 = scalar_lea.sflag [#allocation3], %s278
        %s280 = sand.u32 %s37, 1
        %s281 = smul.addr %s280, 8
        %s282 = scalar_lea.vmem [#allocation2], %s281
        // Predicated region
        $region41: #{tpu_custom_call.1} parent=39 // pred_check
          %p283 = pneg %p50
        $region42: #{tpu_custom_call.1} parent=39 // pred_check_branch
          %285 = sbr.rel (%p283) target = $region44
        $region43: #{tpu_custom_call.1} parent=39 // pred_region
          %286 = dma.done %s279, 128
        $region44: #{tpu_custom_call.1} parent=39 // pred_fallthru
          _
        // Predicated region
        $region45: #{tpu_custom_call.1} parent=39 // pred_check
          %p287 = pneg %p113
        $region46: #{tpu_custom_call.1} parent=39 // pred_check_branch
          %289 = sbr.rel (%p287) target = $region48
        $region47: #{tpu_custom_call.1} parent=39 // pred_region
          %290 = dma.done [#allocation6], 256
        $region48: #{tpu_custom_call.1} parent=39 // pred_fallthru
          _
        %s291 = sand.u32 %s37, 1
        %s292 = scalar_lea.sflag [#allocation3], %s291
        %s293 = sand.u32 %s37, 1
        %s294 = smul.addr %s293, 8
        %s295 = scalar_lea.vmem [#allocation2], %s294
        %p296 = pneg %p50
        %p297 = pneg %p47
        %p298 = pneg %p71
        %p299 = pneg %p68
        %p300 = pneg %p92
        %p301 = pneg %p89
        %p302 = pneg %p113
        %p303 = pneg %p110
        %p304 = pneg %p134
        %p305 = pneg %p131
        %p306 = pneg %p160
        %p307 = pneg %p157
        %s308 = sand.u32 %s147, 1
        %s309 = scalar_lea.sflag [#allocation4], %s308
        %s310 = sand.u32 %s147, 1
        %s311 = smul.addr %s310, 8
        %s312 = scalar_lea.vmem [#allocation7], %s311
        %p313 = pneg %p186
        %p314 = pneg %p183
        %s315 = sand.u32 %s29, 1
        %s316 = scalar_lea.sflag [#allocation9], %s315
        %s317 = sand.u32 %s173, 1
        %s318 = smul.addr %s317, 4
        %s319 = scalar_lea.vmem [#allocation8], %s318
        %p320 = pneg %p212
        %p321 = pneg %p209
        %s322 = sand.u32 %s29, 1
        %s323 = scalar_lea.sflag [#allocation9], %s322
        %s324 = sand.u32 %s199, 1
        %s325 = smul.addr %s324, 4
        %s326 = scalar_lea.vmem [#allocation10], %s325
        %v328 = vld [vmem:[%s282] sm:$0xff]
        %vm329 = vcmask 261120
        %v330 = vsel %vm329, %v328, 0.0
        %331 = vadd.xlane.f32.xlu0 %v330
        %v332 = vpop.xlane.xlu0 %331
        %v333 = vrcp.pop 32.0
        %v334 = vmul.f32 %v332, %v333
        %v335 = vsub.f32 %v328, %v334
        %v336 = vmul.f32 %v335, %v335
        %v337 = vsel %vm329, %v336, 0.0
        %338 = vadd.xlane.f32.xlu0 %v337
        %v339 = vpop.xlane.xlu0 %338
        %v340 = vmul.f32 %v339, %v333
        %v341 = vadd.f32 %v340, 1e-05
        %v342 = vrsqrt.pop %v341
        %v343 = vmul.f32 %v335, %v342
        %v344 = vld [vmem:[%s1] sm:$0x1]
        %v346 = vlaneseq
        %v347 = vshrl.u32 %v346, 7
        %v348 = vsub.s32 0, %v347
        %v349 = vrot.slane %v344, %v348
        %v351 = vmul.f32 %v343, %v349
        %v352 = vld [vmem:[%s2] sm:$0x1]
        %v354 = vlaneseq
        %v355 = vshrl.u32 %v354, 7
        %v356 = vsub.s32 0, %v355
        %v357 = vrot.slane %v352, %v356
        %v359 = vadd.f32 %v351, %v357
        %v360 = vpack.c.bf16 %v359, %v359
        %v361 = vld [vmem:[#allocation5] sm:$0xf]
        %v362 = vld [vmem:[#allocation5 + $0x4] sm:$0xf]
        %v363 = vld [vmem:[#allocation5 + $0x8] sm:$0xf]
        %v364 = vld [vmem:[#allocation5 + $0xc] sm:$0xf]
        %v365 = vld [vmem:[%s4] sm:$0x1]
        %v367 = vlaneseq
        %v368 = vshrl.u32 %v367, 7
        %v369 = vsub.s32 0, %v368
        %v370 = vrot.slane %v365, %v369
        %v376 = vunpack.c.l.b16 %v361
        %v377 = vunpack.c.l.b16 %v362
        %v378 = vunpack.c.l.b16 %v363
        %v379 = vunpack.c.l.b16 %v364
        %v380 = vpack.c.b16 %v377, %v376
        %v381 = vpack.c.b16 %v379, %v378
        %v385 = vsel %vm329, %v360, 0
        %387 = vmatprep.subr.bf16.mxu0 0
        %388 = vmatpush1.bf16.msra.mxu0 %v380
        %389 = vmatprep.subr.bf16.mxu0 0
        %390 = vmatpush1.bf16.msra.mxu0 %v381
        %391 = vmatprep.subr.bf16.mxu0 0
        %392 = vmatpush1.bf16.msra.mxu0 0
        %393 = vmatprep.subr.bf16.mxu0 0
        %394 = vmatpush1.bf16.msra.mxu0 0
        %395 = vmatprep.subr.bf16.mxu0 0
        %396 = vmatpush1.bf16.msra.mxu0 0
        %397 = vmatprep.subr.bf16.mxu0 0
        %398 = vmatpush1.bf16.msra.mxu0 0
        %399 = vmatprep.subr.bf16.mxu0 0
        %400 = vmatpush1.bf16.msra.mxu0 0
        %401 = vmatprep.subr.bf16.mxu0 0
        %402 = vmatpush1.bf16.msra.mxu0 0
        %403 = vmatprep.subr.bf16.mxu0 0
        %404 = vmatpush1.bf16.msra.mxu0 0
        %405 = vmatprep.subr.bf16.mxu0 0
        %406 = vmatpush1.bf16.msra.mxu0 0
        %407 = vmatprep.subr.bf16.mxu0 0
        %408 = vmatpush1.bf16.msra.mxu0 0
        %409 = vmatprep.subr.bf16.mxu0 0
        %410 = vmatpush1.bf16.msra.mxu0 0
        %411 = vmatprep.subr.bf16.mxu0 0
        %412 = vmatpush1.bf16.msra.mxu0 0
        %413 = vmatprep.subr.bf16.mxu0 0
        %414 = vmatpush1.bf16.msra.mxu0 0
        %415 = vmatprep.subr.bf16.mxu0 0
        %416 = vmatpush1.bf16.msra.mxu0 0
        %417 = vmatprep.subr.bf16.mxu0 0
        %418 = vmatpush1.bf16.msra.mxu0 0
        %419 = vmatprep.mubr.bf16.mxu0 0
        %420 = vmatmul.mubr.bf16.gmra.mrb[0].mxu0 %v385
        %v421 = vpop.f32.mrb[0].mxu0
        %v422 = vadd.f32 %v370, %v421
        %v423 = vpop.f32.mrb[0].mxu0
        %v424 = vpop.f32.mrb[0].mxu0
        %v425 = vpop.f32.mrb[0].mxu0
        %426 = vdwg.mxu0
        %v427 = vlaneseq
        %v428 = vshrl.u32 %v427, 7
        %v429 = vlaneseq
        %v430 = vand.u32 %v429, 127
        %vm431 = vcmp.le.s32.totalorder %v430, %v428
        %v432 = vsub.s32 %v428, %v430
        %vm433 = vcmp.lt.s32.totalorder %v432, 4
        %vm434 = vmand %vm431, %vm433
        %436 = vrot.lane.b32.xlu0 %v422, 96
        %v437 = vpop.permute.xlu0 %436
        %vm439 = vcmask 261124
        %440 = vst.msk [vmem:[%s319 - $0x4] sm:$0xf0] %vm439, %v437
        %441 = vrot.lane.b32.xlu0 %v422, 64
        %v442 = vpop.permute.xlu0 %441
        %444 = vst.msk [vmem:[%s326 - $0x4] sm:$0xf0] %vm439, %v442
        %v445 = vmul.f32 %v422, 0.35355338
        %v446 = vpack.c.bf16 %v445, %v445
        %v447 = vpack.c.bf16 %v422, %v422
        %449 = vrot.lane.b32.xlu0 %v447, 96
        %v450 = vpop.permute.xlu0 %449
        %vm451 = vcmask 64512
        %v453 = vsel %vm451, %v446, 0
        %v456 = vsel %vm451, %v450, 0
        %458 = vmatprep.subr.bf16.mxu0 0
        %459 = vmatpush1.bf16.xpose.msra.mxu0 %v456
        %460 = vmatprep.subr.bf16.mxu0 0
        %461 = vmatpush1.bf16.xpose.msra.mxu0 0
        %462 = vmatprep.subr.bf16.mxu0 0
        %463 = vmatpush1.bf16.xpose.msra.mxu0 0
        %464 = vmatprep.subr.bf16.mxu0 0
        %465 = vmatpush1.bf16.xpose.msra.mxu0 0
        %466 = vmatprep.subr.bf16.mxu0 0
        %467 = vmatpush1.bf16.xpose.msra.mxu0 0
        %468 = vmatprep.subr.bf16.mxu0 0
        %469 = vmatpush1.bf16.xpose.msra.mxu0 0
        %470 = vmatprep.subr.bf16.mxu0 0
        %471 = vmatpush1.bf16.xpose.msra.mxu0 0
        %472 = vmatprep.subr.bf16.mxu0 0
        %473 = vmatpush1.bf16.xpose.msra.mxu0 0
        %474 = vmatprep.subr.bf16.mxu0 0
        %475 = vmatpush1.bf16.xpose.msra.mxu0 0
        %476 = vmatprep.subr.bf16.mxu0 0
        %477 = vmatpush1.bf16.xpose.msra.mxu0 0
        %478 = vmatprep.subr.bf16.mxu0 0
        %479 = vmatpush1.bf16.xpose.msra.mxu0 0
        %480 = vmatprep.subr.bf16.mxu0 0
        %481 = vmatpush1.bf16.xpose.msra.mxu0 0
        %482 = vmatprep.subr.bf16.mxu0 0
        %483 = vmatpush1.bf16.xpose.msra.mxu0 0
        %484 = vmatprep.subr.bf16.mxu0 0
        %485 = vmatpush1.bf16.xpose.msra.mxu0 0
        %486 = vmatprep.subr.bf16.mxu0 0
        %487 = vmatpush1.bf16.xpose.msra.mxu0 0
        %488 = vmatprep.subr.bf16.mxu0 0
        %489 = vmatpush1.bf16.xpose.msra.mxu0 0
        %490 = vmatprep.mubr.bf16.mxu0 0
        %491 = vmatmul.mubr.bf16.gmra.mrb[0].mxu0 %v453
        %v492 = vpop.f32.mrb[0].mxu0
        %v493 = vadd.f32 0.0, %v492
        %v494 = vpop.f32.mrb[0].mxu0
        %v495 = vpop.f32.mrb[0].mxu0
        %v496 = vpop.f32.mrb[0].mxu0
        %497 = vdwg.mxu0
        %v498 = vsel %vm434, %v493, -1e+30
        %v499 = vsel %vm451, %v498, -inf
        %500 = vmax.xlane.f32.xlu0 %v499
        %v501 = vpop.xlane.xlu0 %500
        %v502 = vsub.f32 %v498, %v501
        %v503 = vmul.f32 %v502, 1.442695
        %v504 = vpow.pop %v503
        %v505 = vsel %vm451, %v504, 0.0
        %506 = vadd.xlane.f32.xlu0 %v505
        %v507 = vpop.xlane.xlu0 %506
        %v508 = vpack.c.bf16 %v504, %v504
        %509 = vrot.lane.b32.xlu0 %v447, 64
        %v510 = vpop.permute.xlu0 %509
        %v512 = vsel %vm451, %v508, 0
        %vm514 = vcmask 1043456
        %v516 = vsel %vm514, %v510, 0
        %518 = vmatprep.subr.bf16.mxu0 0
        %519 = vmatpush1.bf16.msra.mxu0 %v516
        %520 = vmatprep.subr.bf16.mxu0 0
        %521 = vmatpush1.bf16.msra.mxu0 0
        %522 = vmatprep.subr.bf16.mxu0 0
        %523 = vmatpush1.bf16.msra.mxu0 0
        %524 = vmatprep.subr.bf16.mxu0 0
        %525 = vmatpush1.bf16.msra.mxu0 0
        %526 = vmatprep.subr.bf16.mxu0 0
        %527 = vmatpush1.bf16.msra.mxu0 0
        %528 = vmatprep.subr.bf16.mxu0 0
        %529 = vmatpush1.bf16.msra.mxu0 0
        %530 = vmatprep.subr.bf16.mxu0 0
        %531 = vmatpush1.bf16.msra.mxu0 0
        %532 = vmatprep.subr.bf16.mxu0 0
        %533 = vmatpush1.bf16.msra.mxu0 0
        %534 = vmatprep.subr.bf16.mxu0 0
        %535 = vmatpush1.bf16.msra.mxu0 0
        %536 = vmatprep.subr.bf16.mxu0 0
        %537 = vmatpush1.bf16.msra.mxu0 0
        %538 = vmatprep.subr.bf16.mxu0 0
        %539 = vmatpush1.bf16.msra.mxu0 0
        %540 = vmatprep.subr.bf16.mxu0 0
        %541 = vmatpush1.bf16.msra.mxu0 0
        %542 = vmatprep.subr.bf16.mxu0 0
        %543 = vmatpush1.bf16.msra.mxu0 0
        %544 = vmatprep.subr.bf16.mxu0 0
        %545 = vmatpush1.bf16.msra.mxu0 0
        %546 = vmatprep.subr.bf16.mxu0 0
        %547 = vmatpush1.bf16.msra.mxu0 0
        %548 = vmatprep.subr.bf16.mxu0 0
        %549 = vmatpush1.bf16.msra.mxu0 0
        %550 = vmatprep.mubr.bf16.mxu0 0
        %551 = vmatmul.mubr.bf16.gmra.mrb[0].mxu0 %v512
        %v552 = vpop.f32.mrb[0].mxu0
        %v553 = vadd.f32 0.0, %v552
        %v554 = vpop.f32.mrb[0].mxu0
        %v555 = vpop.f32.mrb[0].mxu0
        %v556 = vpop.f32.mrb[0].mxu0
        %557 = vdwg.mxu0
        %v558 = vrcp.pop %v507
        %v559 = vmul.f32 1.0, %v558
        %v560 = vmul.f32 %v553, %v559
        %561 = vst.msk [vmem:[%s312] sm:$0xff] %vm451, %v560
        %563 = vrot.lane.b32.xlu0 %v446, 120
        %v564 = vpop.permute.xlu0 %563
        %565 = vrot.lane.b32.xlu0 %v447, 88
        %v566 = vpop.permute.xlu0 %565
        %v568 = vsel %vm451, %v564, 0
        %v571 = vsel %vm451, %v566, 0
        %573 = vmatprep.subr.bf16.mxu0 0
        %574 = vmatpush1.bf16.xpose.msra.mxu0 %v571
        %575 = vmatprep.subr.bf16.mxu0 0
        %576 = vmatpush1.bf16.xpose.msra.mxu0 0
        %577 = vmatprep.subr.bf16.mxu0 0
        %578 = vmatpush1.bf16.xpose.msra.mxu0 0
        %579 = vmatprep.subr.bf16.mxu0 0
        %580 = vmatpush1.bf16.xpose.msra.mxu0 0
        %581 = vmatprep.subr.bf16.mxu0 0
        %582 = vmatpush1.bf16.xpose.msra.mxu0 0
        %583 = vmatprep.subr.bf16.mxu0 0
        %584 = vmatpush1.bf16.xpose.msra.mxu0 0
        %585 = vmatprep.subr.bf16.mxu0 0
        %586 = vmatpush1.bf16.xpose.msra.mxu0 0
        %587 = vmatprep.subr.bf16.mxu0 0
        %588 = vmatpush1.bf16.xpose.msra.mxu0 0
        %589 = vmatprep.subr.bf16.mxu0 0
        %590 = vmatpush1.bf16.xpose.msra.mxu0 0
        %591 = vmatprep.subr.bf16.mxu0 0
        %592 = vmatpush1.bf16.xpose.msra.mxu0 0
        %593 = vmatprep.subr.bf16.mxu0 0
        %594 = vmatpush1.bf16.xpose.msra.mxu0 0
        %595 = vmatprep.subr.bf16.mxu0 0
        %596 = vmatpush1.bf16.xpose.msra.mxu0 0
        %597 = vmatprep.subr.bf16.mxu0 0
        %598 = vmatpush1.bf16.xpose.msra.mxu0 0
        %599 = vmatprep.subr.bf16.mxu0 0
        %600 = vmatpush1.bf16.xpose.msra.mxu0 0
        %601 = vmatprep.subr.bf16.mxu0 0
        %602 = vmatpush1.bf16.xpose.msra.mxu0 0
        %603 = vmatprep.subr.bf16.mxu0 0
        %604 = vmatpush1.bf16.xpose.msra.mxu0 0
        %605 = vmatprep.mubr.bf16.mxu0 0
        %606 = vmatmul.mubr.bf16.gmra.mrb[0].mxu0 %v568
        %v607 = vpop.f32.mrb[0].mxu0
        %v608 = vadd.f32 0.0, %v607
        %v609 = vpop.f32.mrb[0].mxu0
        %v610 = vpop.f32.mrb[0].mxu0
        %v611 = vpop.f32.mrb[0].mxu0
        %612 = vdwg.mxu0
        %v613 = vsel %vm434, %v608, -1e+30
        %v614 = vsel %vm451, %v613, -inf
        %615 = vmax.xlane.f32.xlu0 %v614
        %v616 = vpop.xlane.xlu0 %615
        %v617 = vsub.f32 %v613, %v616
        %v618 = vmul.f32 %v617, 1.442695
        %v619 = vpow.pop %v618
        %v620 = vsel %vm451, %v619, 0.0
        %621 = vadd.xlane.f32.xlu0 %v620
        %v622 = vpop.xlane.xlu0 %621
        %v623 = vpack.c.bf16 %v619, %v619
        %624 = vrot.lane.b32.xlu0 %v447, 56
        %v625 = vpop.permute.xlu0 %624
        %v627 = vsel %vm451, %v623, 0
        %v630 = vsel %vm514, %v625, 0
        %632 = vmatprep.subr.bf16.mxu0 0
        %633 = vmatpush1.bf16.msra.mxu0 %v630
        %634 = vmatprep.subr.bf16.mxu0 0
        %635 = vmatpush1.bf16.msra.mxu0 0
        %636 = vmatprep.subr.bf16.mxu0 0
        %637 = vmatpush1.bf16.msra.mxu0 0
        %638 = vmatprep.subr.bf16.mxu0 0
        %639 = vmatpush1.bf16.msra.mxu0 0
        %640 = vmatprep.subr.bf16.mxu0 0
        %641 = vmatpush1.bf16.msra.mxu0 0
        %642 = vmatprep.subr.bf16.mxu0 0
        %643 = vmatpush1.bf16.msra.mxu0 0
        %644 = vmatprep.subr.bf16.mxu0 0
        %645 = vmatpush1.bf16.msra.mxu0 0
        %646 = vmatprep.subr.bf16.mxu0 0
        %647 = vmatpush1.bf16.msra.mxu0 0
        %648 = vmatprep.subr.bf16.mxu0 0
        %649 = vmatpush1.bf16.msra.mxu0 0
        %650 = vmatprep.subr.bf16.mxu0 0
        %651 = vmatpush1.bf16.msra.mxu0 0
        %652 = vmatprep.subr.bf16.mxu0 0
        %653 = vmatpush1.bf16.msra.mxu0 0
        %654 = vmatprep.subr.bf16.mxu0 0
        %655 = vmatpush1.bf16.msra.mxu0 0
        %656 = vmatprep.subr.bf16.mxu0 0
        %657 = vmatpush1.bf16.msra.mxu0 0
        %658 = vmatprep.subr.bf16.mxu0 0
        %659 = vmatpush1.bf16.msra.mxu0 0
        %660 = vmatprep.subr.bf16.mxu0 0
        %661 = vmatpush1.bf16.msra.mxu0 0
        %662 = vmatprep.subr.bf16.mxu0 0
        %663 = vmatpush1.bf16.msra.mxu0 0
        %664 = vmatprep.mubr.bf16.mxu0 0
        %665 = vmatmul.mubr.bf16.gmra.mrb[0].mxu0 %v627
        %v666 = vpop.f32.mrb[0].mxu0
        %v667 = vadd.f32 0.0, %v666
        %v668 = vpop.f32.mrb[0].mxu0
        %v669 = vpop.f32.mrb[0].mxu0
        %v670 = vpop.f32.mrb[0].mxu0
        %671 = vdwg.mxu0
        %v672 = vrcp.pop %v622
        %v673 = vmul.f32 1.0, %v672
        %v674 = vmul.f32 %v667, %v673
        %676 = vrot.lane.b32.xlu0 %v674, 8
        %v677 = vpop.permute.xlu0 %676
        %vm679 = vcmask 130112
        %680 = vst.msk [vmem:[%s312] sm:$0xff] %vm679, %v677
        %681 = vrot.lane.b32.xlu0 %v446, 112
        %v682 = vpop.permute.xlu0 %681
        %683 = vrot.lane.b32.xlu0 %v447, 80
        %v684 = vpop.permute.xlu0 %683
        %v686 = vsel %vm451, %v682, 0
        %v689 = vsel %vm451, %v684, 0
        %691 = vmatprep.subr.bf16.mxu0 0
        %692 = vmatpush1.bf16.xpose.msra.mxu0 %v689
        %693 = vmatprep.subr.bf16.mxu0 0
        %694 = vmatpush1.bf16.xpose.msra.mxu0 0
        %695 = vmatprep.subr.bf16.mxu0 0
        %696 = vmatpush1.bf16.xpose.msra.mxu0 0
        %697 = vmatprep.subr.bf16.mxu0 0
        %698 = vmatpush1.bf16.xpose.msra.mxu0 0
        %699 = vmatprep.subr.bf16.mxu0 0
        %700 = vmatpush1.bf16.xpose.msra.mxu0 0
        %701 = vmatprep.subr.bf16.mxu0 0
        %702 = vmatpush1.bf16.xpose.msra.mxu0 0
        %703 = vmatprep.subr.bf16.mxu0 0
        %704 = vmatpush1.bf16.xpose.msra.mxu0 0
        %705 = vmatprep.subr.bf16.mxu0 0
        %706 = vmatpush1.bf16.xpose.msra.mxu0 0
        %707 = vmatprep.subr.bf16.mxu0 0
        %708 = vmatpush1.bf16.xpose.msra.mxu0 0
        %709 = vmatprep.subr.bf16.mxu0 0
        %710 = vmatpush1.bf16.xpose.msra.mxu0 0
        %711 = vmatprep.subr.bf16.mxu0 0
        %712 = vmatpush1.bf16.xpose.msra.mxu0 0
        %713 = vmatprep.subr.bf16.mxu0 0
        %714 = vmatpush1.bf16.xpose.msra.mxu0 0
        %715 = vmatprep.subr.bf16.mxu0 0
        %716 = vmatpush1.bf16.xpose.msra.mxu0 0
        %717 = vmatprep.subr.bf16.mxu0 0
        %718 = vmatpush1.bf16.xpose.msra.mxu0 0
        %719 = vmatprep.subr.bf16.mxu0 0
        %720 = vmatpush1.bf16.xpose.msra.mxu0 0
        %721 = vmatprep.subr.bf16.mxu0 0
        %722 = vmatpush1.bf16.xpose.msra.mxu0 0
        %723 = vmatprep.mubr.bf16.mxu0 0
        %724 = vmatmul.mubr.bf16.gmra.mrb[0].mxu0 %v686
        %v725 = vpop.f32.mrb[0].mxu0
        %v726 = vadd.f32 0.0, %v725
        %v727 = vpop.f32.mrb[0].mxu0
        %v728 = vpop.f32.mrb[0].mxu0
        %v729 = vpop.f32.mrb[0].mxu0
        %730 = vdwg.mxu0
        %v731 = vsel %vm434, %v726, -1e+30
        %v732 = vsel %vm451, %v731, -inf
        %733 = vmax.xlane.f32.xlu0 %v732
        %v734 = vpop.xlane.xlu0 %733
        %v735 = vsub.f32 %v731, %v734
        %v736 = vmul.f32 %v735, 1.442695
        %v737 = vpow.pop %v736
        %v738 = vsel %vm451, %v737, 0.0
        %739 = vadd.xlane.f32.xlu0 %v738
        %v740 = vpop.xlane.xlu0 %739
        %v741 = vpack.c.bf16 %v737, %v737
        %742 = vrot.lane.b32.xlu0 %v447, 48
        %v743 = vpop.permute.xlu0 %742
        %v745 = vsel %vm451, %v741, 0
        %v748 = vsel %vm514, %v743, 0
        %750 = vmatprep.subr.bf16.mxu0 0
        %751 = vmatpush1.bf16.msra.mxu0 %v748
        %752 = vmatprep.subr.bf16.mxu0 0
        %753 = vmatpush1.bf16.msra.mxu0 0
        %754 = vmatprep.subr.bf16.mxu0 0
        %755 = vmatpush1.bf16.msra.mxu0 0
        %756 = vmatprep.subr.bf16.mxu0 0
        %757 = vmatpush1.bf16.msra.mxu0 0
        %758 = vmatprep.subr.bf16.mxu0 0
        %759 = vmatpush1.bf16.msra.mxu0 0
        %760 = vmatprep.subr.bf16.mxu0 0
        %761 = vmatpush1.bf16.msra.mxu0 0
        %762 = vmatprep.subr.bf16.mxu0 0
        %763 = vmatpush1.bf16.msra.mxu0 0
        %764 = vmatprep.subr.bf16.mxu0 0
        %765 = vmatpush1.bf16.msra.mxu0 0
        %766 = vmatprep.subr.bf16.mxu0 0
        %767 = vmatpush1.bf16.msra.mxu0 0
        %768 = vmatprep.subr.bf16.mxu0 0
        %769 = vmatpush1.bf16.msra.mxu0 0
        %770 = vmatprep.subr.bf16.mxu0 0
        %771 = vmatpush1.bf16.msra.mxu0 0
        %772 = vmatprep.subr.bf16.mxu0 0
        %773 = vmatpush1.bf16.msra.mxu0 0
        %774 = vmatprep.subr.bf16.mxu0 0
        %775 = vmatpush1.bf16.msra.mxu0 0
        %776 = vmatprep.subr.bf16.mxu0 0
        %777 = vmatpush1.bf16.msra.mxu0 0
        %778 = vmatprep.subr.bf16.mxu0 0
        %779 = vmatpush1.bf16.msra.mxu0 0
        %780 = vmatprep.subr.bf16.mxu0 0
        %781 = vmatpush1.bf16.msra.mxu0 0
        %782 = vmatprep.mubr.bf16.mxu0 0
        %783 = vmatmul.mubr.bf16.gmra.mrb[0].mxu0 %v745
        %v784 = vpop.f32.mrb[0].mxu0
        %v785 = vadd.f32 0.0, %v784
        %v786 = vpop.f32.mrb[0].mxu0
        %v787 = vpop.f32.mrb[0].mxu0
        %v788 = vpop.f32.mrb[0].mxu0
        %789 = vdwg.mxu0
        %v790 = vrcp.pop %v740
        %v791 = vmul.f32 1.0, %v790
        %v792 = vmul.f32 %v785, %v791
        %794 = vrot.lane.b32.xlu0 %v792, 16
        %v795 = vpop.permute.xlu0 %794
        %vm797 = vcmask 195712
        %798 = vst.msk [vmem:[%s312] sm:$0xff] %vm797, %v795
        %799 = vrot.lane.b32.xlu0 %v446, 104
        %v800 = vpop.permute.xlu0 %799
        %801 = vrot.lane.b32.xlu0 %v447, 72
        %v802 = vpop.permute.xlu0 %801
        %v804 = vsel %vm451, %v800, 0
        %v807 = vsel %vm451, %v802, 0
        %809 = vmatprep.subr.bf16.mxu0 0
        %810 = vmatpush1.bf16.xpose.msra.mxu0 %v807
        %811 = vmatprep.subr.bf16.mxu0 0
        %812 = vmatpush1.bf16.xpose.msra.mxu0 0
        %813 = vmatprep.subr.bf16.mxu0 0
        %814 = vmatpush1.bf16.xpose.msra.mxu0 0
        %815 = vmatprep.subr.bf16.mxu0 0
        %816 = vmatpush1.bf16.xpose.msra.mxu0 0
        %817 = vmatprep.subr.bf16.mxu0 0
        %818 = vmatpush1.bf16.xpose.msra.mxu0 0
        %819 = vmatprep.subr.bf16.mxu0 0
        %820 = vmatpush1.bf16.xpose.msra.mxu0 0
        %821 = vmatprep.subr.bf16.mxu0 0
        %822 = vmatpush1.bf16.xpose.msra.mxu0 0
        %823 = vmatprep.subr.bf16.mxu0 0
        %824 = vmatpush1.bf16.xpose.msra.mxu0 0
        %825 = vmatprep.subr.bf16.mxu0 0
        %826 = vmatpush1.bf16.xpose.msra.mxu0 0
        %827 = vmatprep.subr.bf16.mxu0 0
        %828 = vmatpush1.bf16.xpose.msra.mxu0 0
        %829 = vmatprep.subr.bf16.mxu0 0
        %830 = vmatpush1.bf16.xpose.msra.mxu0 0
        %831 = vmatprep.subr.bf16.mxu0 0
        %832 = vmatpush1.bf16.xpose.msra.mxu0 0
        %833 = vmatprep.subr.bf16.mxu0 0
        %834 = vmatpush1.bf16.xpose.msra.mxu0 0
        %835 = vmatprep.subr.bf16.mxu0 0
        %836 = vmatpush1.bf16.xpose.msra.mxu0 0
        %837 = vmatprep.subr.bf16.mxu0 0
        %838 = vmatpush1.bf16.xpose.msra.mxu0 0
        %839 = vmatprep.subr.bf16.mxu0 0
        %840 = vmatpush1.bf16.xpose.msra.mxu0 0
        %841 = vmatprep.mubr.bf16.mxu0 0
        %842 = vmatmul.mubr.bf16.gmra.mrb[0].mxu0 %v804
        %v843 = vpop.f32.mrb[0].mxu0
        %v844 = vadd.f32 0.0, %v843
        %v845 = vpop.f32.mrb[0].mxu0
        %v846 = vpop.f32.mrb[0].mxu0
        %v847 = vpop.f32.mrb[0].mxu0
        %848 = vdwg.mxu0
        %v849 = vsel %vm434, %v844, -1e+30
        %v850 = vsel %vm451, %v849, -inf
        %851 = vmax.xlane.f32.xlu0 %v850
        %v852 = vpop.xlane.xlu0 %851
        %v853 = vsub.f32 %v849, %v852
        %v854 = vmul.f32 %v853, 1.442695
        %v855 = vpow.pop %v854
        %v856 = vsel %vm451, %v855, 0.0
        %857 = vadd.xlane.f32.xlu0 %v856
        %v858 = vpop.xlane.xlu0 %857
        %v859 = vpack.c.bf16 %v855, %v855
        %860 = vrot.lane.b32.xlu0 %v447, 40
        %v861 = vpop.permute.xlu0 %860
        %v863 = vsel %vm451, %v859, 0
        %v866 = vsel %vm514, %v861, 0
        %868 = vmatprep.subr.bf16.mxu0 0
        %869 = vmatpush1.bf16.msra.mxu0 %v866
        %870 = vmatprep.subr.bf16.mxu0 0
        %871 = vmatpush1.bf16.msra.mxu0 0
        %872 = vmatprep.subr.bf16.mxu0 0
        %873 = vmatpush1.bf16.msra.mxu0 0
        %874 = vmatprep.subr.bf16.mxu0 0
        %875 = vmatpush1.bf16.msra.mxu0 0
        %876 = vmatprep.subr.bf16.mxu0 0
        %877 = vmatpush1.bf16.msra.mxu0 0
        %878 = vmatprep.subr.bf16.mxu0 0
        %879 = vmatpush1.bf16.msra.mxu0 0
        %880 = vmatprep.subr.bf16.mxu0 0
        %881 = vmatpush1.bf16.msra.mxu0 0
        %882 = vmatprep.subr.bf16.mxu0 0
        %883 = vmatpush1.bf16.msra.mxu0 0
        %884 = vmatprep.subr.bf16.mxu0 0
        %885 = vmatpush1.bf16.msra.mxu0 0
        %886 = vmatprep.subr.bf16.mxu0 0
        %887 = vmatpush1.bf16.msra.mxu0 0
        %888 = vmatprep.subr.bf16.mxu0 0
        %889 = vmatpush1.bf16.msra.mxu0 0
        %890 = vmatprep.subr.bf16.mxu0 0
        %891 = vmatpush1.bf16.msra.mxu0 0
        %892 = vmatprep.subr.bf16.mxu0 0
        %893 = vmatpush1.bf16.msra.mxu0 0
        %894 = vmatprep.subr.bf16.mxu0 0
        %895 = vmatpush1.bf16.msra.mxu0 0
        %896 = vmatprep.subr.bf16.mxu0 0
        %897 = vmatpush1.bf16.msra.mxu0 0
        %898 = vmatprep.subr.bf16.mxu0 0
        %899 = vmatpush1.bf16.msra.mxu0 0
        %900 = vmatprep.mubr.bf16.mxu0 0
        %901 = vmatmul.mubr.bf16.gmra.mrb[0].mxu0 %v863
        %v902 = vpop.f32.mrb[0].mxu0
        %v903 = vadd.f32 0.0, %v902
        %v904 = vpop.f32.mrb[0].mxu0
        %v905 = vpop.f32.mrb[0].mxu0
        %v906 = vpop.f32.mrb[0].mxu0
        %907 = vdwg.mxu0
        %v908 = vrcp.pop %v858
        %v909 = vmul.f32 1.0, %v908
        %v910 = vmul.f32 %v903, %v909
        %912 = vrot.lane.b32.xlu0 %v910, 24
        %v913 = vpop.permute.xlu0 %912
        %vm915 = vcmask 261312
        %916 = vst.msk [vmem:[%s312] sm:$0xff] %vm915, %v913
        %s917 = sand.u32 %s147, 1
        %s918 = scalar_lea.sflag [#allocation4], %s917
        %s919 = sand.u32 %s147, 1
        %s920 = smul.addr %s919, 8
        %s921 = scalar_lea.vmem [#allocation7], %s920
        %s922 = sand.u32 %s29, 1
        %s923 = scalar_lea.sflag [#allocation9], %s922
        %s924 = sand.u32 %s173, 1
        %s925 = smul.addr %s924, 4
        %s926 = scalar_lea.vmem [#allocation8], %s925
        %s927 = sand.u32 %s29, 1
        %s928 = scalar_lea.sflag [#allocation9], %s927
        %s929 = sand.u32 %s199, 1
        %s930 = smul.addr %s929, 4
        %s931 = scalar_lea.vmem [#allocation10], %s930
        // Predicated region
        $region49: #{tpu_custom_call.1} parent=39 // pred_check
          %p932 = pneg %p157
        $region50: #{tpu_custom_call.1} parent=39 // pred_check_branch
          %934 = sbr.rel (%p932) target = $region52
        $region51: #{tpu_custom_call.1} parent=39 // pred_region
          %s936 = ssub.s32 128, 128
          %937 = vsyncadd %s918, %s936
          %s938 = smul.addr %s29, 128
          %s939 = scalar_lea.hbm %s5, %s938
          %s941 = sshll.u32 %s921, 4
          %s942 = int_to_ptr.vmem [resolvable:$true] %s941
          %944 = dma.vmem_to_hbm [thread:$0]  %s942, 128, %s939, %s918
        $region52: #{tpu_custom_call.1} parent=39 // pred_fallthru
          _
        // Predicated region
        $region53: #{tpu_custom_call.1} parent=39 // pred_check
          %p945 = pneg %p183
        $region54: #{tpu_custom_call.1} parent=39 // pred_check_branch
          %947 = sbr.rel (%p945) target = $region56
        $region55: #{tpu_custom_call.1} parent=39 // pred_region
          %s949 = ssub.s32 64, 64
          %950 = vsyncadd %s923, %s949
          %s951 = smul.addr %s29, 64
          %s952 = scalar_lea.hbm %s6, %s951
          %s954 = sshll.u32 %s926, 4
          %s955 = int_to_ptr.vmem [resolvable:$true] %s954
          %957 = dma.vmem_to_hbm [thread:$0]  %s955, 64, %s952, %s923
        $region56: #{tpu_custom_call.1} parent=39 // pred_fallthru
          _
        // Predicated region
        $region57: #{tpu_custom_call.1} parent=39 // pred_check
          %p958 = pneg %p209
        $region58: #{tpu_custom_call.1} parent=39 // pred_check_branch
          %960 = sbr.rel (%p958) target = $region60
        $region59: #{tpu_custom_call.1} parent=39 // pred_region
          %s962 = ssub.s32 64, 64
          %963 = vsyncadd %s928, %s962
          %s964 = smul.addr %s29, 64
          %s965 = scalar_lea.hbm %s7, %s964
          %s967 = sshll.u32 %s931, 4
          %s968 = int_to_ptr.vmem [resolvable:$true] %s967
          %970 = dma.vmem_to_hbm [thread:$0]  %s968, 64, %s965, %s928
        $region60: #{tpu_custom_call.1} parent=39 // pred_fallthru
          _
      $region40: #{tpu_custom_call.1} parent=5 // pred_fallthru
        _
      %p971 = scmp.le.s32.totalorder 2, %s24
      // Predicated region
      $region61: #{tpu_custom_call.1} parent=5 // pred_check
        %p972 = pneg %p971
      $region62: #{tpu_custom_call.1} parent=5 // pred_check_branch
        %974 = sbr.rel (%p972) target = $region64
      $region63: #{tpu_custom_call.1} parent=5 // pred_region
        %s975 = ssub.s32 %s24, 2
        // Predicated region
        $region65: #{tpu_custom_call.1} parent=63 // pred_check
          %p976 = pneg %p163
        $region66: #{tpu_custom_call.1} parent=63 // pred_check_branch
          %978 = sbr.rel (%p976) target = $region68
        $region67: #{tpu_custom_call.1} parent=63 // pred_region
          %s979 = sand.u32 %s148, 1
          %s980 = scalar_lea.sflag [#allocation4], %s979
          %s981 = sand.u32 %s148, 1
          %s982 = smul.addr %s981, 8
          %s983 = scalar_lea.vmem [#allocation7], %s982
          %984 = dma.done %s980, 128
        $region68: #{tpu_custom_call.1} parent=63 // pred_fallthru
          _
        // Predicated region
        $region69: #{tpu_custom_call.1} parent=63 // pred_check
          %p985 = pneg %p189
        $region70: #{tpu_custom_call.1} parent=63 // pred_check_branch
          %987 = sbr.rel (%p985) target = $region72
        $region71: #{tpu_custom_call.1} parent=63 // pred_region
          %s988 = sand.u32 %s30, 1
          %s989 = scalar_lea.sflag [#allocation9], %s988
          %s990 = sand.u32 %s174, 1
          %s991 = smul.addr %s990, 4
          %s992 = scalar_lea.vmem [#allocation8], %s991
          %993 = dma.done %s989, 64
        $region72: #{tpu_custom_call.1} parent=63 // pred_fallthru
          _
        // Predicated region
        $region73: #{tpu_custom_call.1} parent=63 // pred_check
          %p994 = pneg %p215
        $region74: #{tpu_custom_call.1} parent=63 // pred_check_branch
          %996 = sbr.rel (%p994) target = $region76
        $region75: #{tpu_custom_call.1} parent=63 // pred_region
          %s997 = sand.u32 %s30, 1
          %s998 = scalar_lea.sflag [#allocation9], %s997
          %s999 = sand.u32 %s200, 1
          %s1000 = smul.addr %s999, 4
          %s1001 = scalar_lea.vmem [#allocation10], %s1000
          %1002 = dma.done %s998, 64
        $region76: #{tpu_custom_call.1} parent=63 // pred_fallthru
          _
      $region64: #{tpu_custom_call.1} parent=5 // pred_fallthru
        _
    $region6: #{tpu_custom_call.1} parent=1 // loop_footer
      %s28 = sadd.s32 1, %s24
    $region7: #{tpu_custom_call.1} parent=1 // loop_footer_branch
      %23 = sbr.rel target = $region3
    $region8: #{tpu_custom_call.1} parent=1 // loop_exit
      _
    %1003 = vsyncpa [#allocation3], 1
    %s1004 = scalar_lea.sflag [#allocation3], 1
    %1005 = vsyncpa %s1004, 1
    %1006 = vsyncpa [#allocation6], 1
    %1007 = vsyncpa [#allocation4], 1
    %s1008 = scalar_lea.sflag [#allocation4], 1
    %1009 = vsyncpa %s1008, 1
    %1010 = vsyncpa [#allocation9], 1
    %s1011 = scalar_lea.sflag [#allocation9], 1
    %1012 = vsyncpa %s1011, 1

</llo_original>
